<compile_context>
chip_gen: v7x
topology: tpu7x:2x2x1
jax: 0.10.0
libtpu: 0.0.40
codegen_flags: <defaults>
</compile_context>

<pallas_src>
import numpy as np
import jax
import jax.numpy as jnp
from jax.experimental import pallas as pl
from jax.experimental.pallas import tpu as pltpu


def _cdiv(a, b):
    return -(-a // b)


def _const_broadcast_kernel(const_ref, out_ref):
    # const_ref: (1, TN)  ->  out_ref: (TB, TN)   (broadcast along sublanes)
    out_ref[...] = jnp.broadcast_to(const_ref[...], out_ref.shape)


def _choose_tiles(B, N, itemsize, out_tile_bytes=4 << 20):
    """Pick (TB, TN) so the output tile is ~out_tile_bytes and BlockSpec-legal."""
    # sublane packing for the dtype: 32-bit -> 8, 16-bit -> 16, 8-bit -> 32
    packing = {4: 8, 2: 16, 1: 32}.get(itemsize, 8)

    # Lane tile: prefer the whole row (always legal: block dim == array dim).
    max_lanes = max(128, (out_tile_bytes // (packing * itemsize)) // 128 * 128)
    if N <= max_lanes:
        TN = N
    elif N % 128 == 0:
        # Largest multiple-of-128 divisor of N under the cap (lane-dense tiles,
        # no tail masking, no collapse to 128 for awkward N).
        TN, d = 128, 128
        while d <= max_lanes:
            if N % d == 0:
                TN = d
            d += 128
    else:
        # Huge, non-128-multiple row: cdiv-tiled lanes, Pallas masks the tail.
        TN = max_lanes

    # Batch tile: as many rows as fit the budget, in sublane-packing multiples.
    rows = max(packing, out_tile_bytes // (TN * itemsize))
    rows = rows // packing * packing
    TB = min(B, rows)
    if TB > packing:
        TB = TB // packing * packing          # partial last block is masked

    # v7x megacore: keep >=2 steps along the "parallel" batch axis when the
    # grid would otherwise be a single step, so both TensorCores get work.
    if _cdiv(N, TN) == 1 and _cdiv(B, TB) == 1 and TB >= 2 * packing:
        TB = max(packing, (TB // 2) // packing * packing)

    return TB, TN


def constant_input_forward(inp, const_param, *, min_pallas_bytes=16 * 1024):
    """Pallas equivalent of ConstantInput.forward(input).

    inp:         any array whose leading dim is the batch size (only its shape
                 is used, matching the PyTorch module).
    const_param: (1, C, size, size) learned constant.
    returns:     (B, C, size, size)
    """
    B = int(inp.shape[0])
    _, C, Hs, Ws = const_param.shape
    N = C * Hs * Ws
    itemsize = jnp.dtype(const_param.dtype).itemsize

    # Tiny problem: pallas_call dispatch costs more than the whole write; let
    # XLA fuse the broadcast into whatever consumes it.
    if B * N * itemsize < min_pallas_bytes:
        return jnp.broadcast_to(const_param, (B, C, Hs, Ws))

    const_flat = const_param.reshape(1, N)       # free reshape, lane axis = N
    TB, TN = _choose_tiles(B, N, itemsize)

    # Batch is the innermost grid axis: the const block index (0, n) is then
    # constant across consecutive steps, so Pallas keeps it VMEM-resident.
    grid = (_cdiv(N, TN), _cdiv(B, TB))

    out_flat = pl.pallas_call(
        _const_broadcast_kernel,
        out_shape=jax.ShapeDtypeStruct((B, N), const_param.dtype),
        grid=grid,
        in_specs=[pl.BlockSpec((1, TN), lambda n, b: (0, n))],
        out_specs=pl.BlockSpec((TB, TN), lambda n, b: (b, n)),
        compiler_params=pltpu.CompilerParams(
            dimension_semantics=("parallel", "parallel")),
    )(const_flat)

    return out_flat.reshape(B, C, Hs, Ws)


if __name__ == "__main__":
    key = jax.random.PRNGKey(0)
    kc, kz = jax.random.split(key)

    # ConstantInput(channel=512, size=4), batch=2 — realistic StyleGAN2 channel
    # count so the Pallas path (not the tiny-case bypass) is exercised.
    B, C, SIZE = 2, 512, 4
    const_param = jax.random.normal(kc, (1, C, SIZE, SIZE), jnp.float32)
    latent = jax.random.normal(kz, (B, 32), jnp.float32)   # only batch dim used

    out = constant_input_forward(latent, const_param)
    out = jax.block_until_ready(out)

    # Reference: ConstantInput.forward == tile the constant along batch.
    ref = jnp.tile(const_param, (B, 1, 1, 1))
    np.testing.assert_allclose(np.asarray(out), np.asarray(ref), rtol=0, atol=0)

    # Tiny-shape path (bypasses pallas_call, pure jnp broadcast).
    small_const = jax.random.normal(kc, (1, 4, 4, 4), jnp.float32)
    out_small = jax.block_until_ready(constant_input_forward(latent, small_const))
    np.testing.assert_allclose(np.asarray(out_small),
                               np.asarray(jnp.tile(small_const, (B, 1, 1, 1))),
                               rtol=0, atol=0)

    print("KERNEL_OK")
</pallas_src>

<mosaic_0001>
module attributes {stable_mosaic.version = 11 : i64} {
  func.func @_const_broadcast_kernel(%arg0: i32, %arg1: i32, %arg2: memref<1x8192xf32, #tpu.memory_space<vmem>>, %arg3: memref<2x8192xf32, #tpu.memory_space<vmem>>) attributes {dimension_semantics = [#tpu.dimension_semantics<parallel>, #tpu.dimension_semantics<parallel>], iteration_bounds = array<i64: 1, 1>, scalar_prefetch = 0 : i64, scratch_operands = 0 : i64, tpu.core_type = #tpu.core_type<tc>, window_params = [{transform_indices = @transform_0, window_bounds = array<i64: 1, 8192>}, {transform_indices = @transform_1, window_bounds = array<i64: 2, 8192>}]} {
    %c0 = arith.constant 0 : index
    %c0_0 = arith.constant 0 : index
    %0 = vector.load %arg2[%c0, %c0_0] : memref<1x8192xf32, #tpu.memory_space<vmem>>, vector<1x8192xf32>
    %1 = vector.shape_cast %0 : vector<1x8192xf32> to vector<1x8192xf32>
    %2 = vector.broadcast %1 : vector<1x8192xf32> to vector<2x8192xf32>
    %c0_1 = arith.constant 0 : index
    %c0_2 = arith.constant 0 : index
    %3 = vector.load %arg3[%c0_1, %c0_2] : memref<2x8192xf32, #tpu.memory_space<vmem>>, vector<2x8192xf32>
    tpu.vector_store %arg3[%c0_1, %c0_2], %2 {strides = array<i32>} : memref<2x8192xf32, #tpu.memory_space<vmem>>, vector<2x8192xf32>,
    return
  }
  func.func @transform_0(%arg0: i32, %arg1: i32) -> (i32, i32) {
    %c0_i32 = arith.constant 0 : i32
    %c0_i32_0 = arith.constant 0 : i32
    return %c0_i32, %arg0 : i32, i32
  }
  func.func @transform_1(%arg0: i32, %arg1: i32) -> (i32, i32) {
    %c0_i32 = arith.constant 0 : i32
    return %arg1, %arg0 : i32, i32
  }
}

</mosaic_0001>

<llo_original>
// kernel: tpu_custom_call.1
$region0: #{tpu_custom_call.1}
  #allocation0 [shape = 'u32[]', space=smem, size = 0x4, offset = 0x4, fixed_abs, tag = 'smem constant byte address 0x4 - core index']
  #allocation1 [shape = 'u32[144,128]{1,0:T(1,128)}', space=vmem, size = 0x12000, scoped, tag = 'internal scratch']
  %s0 = inlined_call_operand.hbm [shape: f32[1,8192], index: 0, kind: input, shape index: {}]
  %s1 = inlined_call_operand.hbm [shape: f32[2,8192], index: 1, kind: output, shape index: {}]
  %s2 = sld [smem:[#allocation0]]
  $region18: #{tpu_custom_call.1} parent=0
    _
  %s4 = ssub.s32 1, %s2
  %s5 = scalar_select 0, %s4, %s2
  $region1: #{tpu_custom_call.1} parent=0
    #allocation2 [shape = 'u8[32768]{0}', space=vmem, size = 0x8000, scoped, tag = 'input window, operand 0, single buffered']
    #allocation3 [shape = 's32[1]{0}', space=sflag, size = 0x4, scoped, tag = 'scoped memory for tpu_custom_call.1']
    #allocation4 [shape = 's32[1]{0}', space=sflag, size = 0x4, scoped, tag = 'scoped memory for tpu_custom_call.1']
    #allocation5 [shape = 'u8[65536]{0}', space=vmem, size = 0x10000, scoped, tag = 'output window, operand 0, single buffered']
    %6 = vsyncpa [#allocation3], 0
    %7 = vsyncpa [#allocation4], 0
    // Predicated region
    $region2: #{tpu_custom_call.1} parent=1 // pred_check
      _
    $region3: #{tpu_custom_call.1} parent=1 // pred_check_branch
      %9 = sbr.rel (0) target = $region5
    $region4: #{tpu_custom_call.1} parent=1 // pred_region
      %s11 = ssub.s32 1024, 1024
      %12 = vsyncadd [#allocation3], %s11
      %s14 = sshll.u32 [#allocation2], 4
      %s15 = int_to_ptr.vmem [resolvable:$true] %s14
      %17 = dma.hbm_to_vmem [thread:$0]  %s0, 1024, %s15, [#allocation3]
    $region5: #{tpu_custom_call.1} parent=1 // pred_fallthru
      _
    // Predicated region
    $region6: #{tpu_custom_call.1} parent=1 // pred_check
      _
    $region7: #{tpu_custom_call.1} parent=1 // pred_check_branch
      %19 = sbr.rel (0) target = $region9
    $region8: #{tpu_custom_call.1} parent=1 // pred_region
      %20 = dma.done [#allocation3], 1024
    $region9: #{tpu_custom_call.1} parent=1 // pred_fallthru
      _
    %v21 = vld [vmem:[#allocation2] sm:$0xff]
    %v22 = vld [vmem:[#allocation2 + $0x8] sm:$0xff]
    %v23 = vld [vmem:[#allocation2 + $0x10] sm:$0xff]
    %v24 = vld [vmem:[#allocation2 + $0x18] sm:$0xff]
    %v25 = vld [vmem:[#allocation2 + $0x20] sm:$0xff]
    %v26 = vld [vmem:[#allocation2 + $0x28] sm:$0xff]
    %v27 = vld [vmem:[#allocation2 + $0x30] sm:$0xff]
    %v28 = vld [vmem:[#allocation2 + $0x38] sm:$0xff]
    %v37 = vlaneseq
    %v38 = vshrl.u32 %v37, 7
    %v39 = vsub.s32 0, %v38
    %v40 = vrot.slane %v21, %v39
    %v41 = vlaneseq
    %v42 = vshrl.u32 %v41, 7
    %v43 = vsub.s32 1, %v42
    %v44 = vrot.slane %v21, %v43
    %v45 = vlaneseq
    %v46 = vshrl.u32 %v45, 7
    %v47 = vsub.s32 2, %v46
    %v48 = vrot.slane %v21, %v47
    %v49 = vlaneseq
    %v50 = vshrl.u32 %v49, 7
    %v51 = vsub.s32 3, %v50
    %v52 = vrot.slane %v21, %v51
    %v53 = vlaneseq
    %v54 = vshrl.u32 %v53, 7
    %v55 = vsub.s32 4, %v54
    %v56 = vrot.slane %v21, %v55
    %v57 = vlaneseq
    %v58 = vshrl.u32 %v57, 7
    %v59 = vsub.s32 5, %v58
    %v60 = vrot.slane %v21, %v59
    %v61 = vlaneseq
    %v62 = vshrl.u32 %v61, 7
    %v63 = vsub.s32 6, %v62
    %v64 = vrot.slane %v21, %v63
    %v65 = vlaneseq
    %v66 = vshrl.u32 %v65, 7
    %v67 = vsub.s32 7, %v66
    %v68 = vrot.slane %v21, %v67
    %v69 = vlaneseq
    %v70 = vshrl.u32 %v69, 7
    %v71 = vsub.s32 0, %v70
    %v72 = vrot.slane %v22, %v71
    %v73 = vlaneseq
    %v74 = vshrl.u32 %v73, 7
    %v75 = vsub.s32 1, %v74
    %v76 = vrot.slane %v22, %v75
    %v77 = vlaneseq
    %v78 = vshrl.u32 %v77, 7
    %v79 = vsub.s32 2, %v78
    %v80 = vrot.slane %v22, %v79
    %v81 = vlaneseq
    %v82 = vshrl.u32 %v81, 7
    %v83 = vsub.s32 3, %v82
    %v84 = vrot.slane %v22, %v83
    %v85 = vlaneseq
    %v86 = vshrl.u32 %v85, 7
    %v87 = vsub.s32 4, %v86
    %v88 = vrot.slane %v22, %v87
    %v89 = vlaneseq
    %v90 = vshrl.u32 %v89, 7
    %v91 = vsub.s32 5, %v90
    %v92 = vrot.slane %v22, %v91
    %v93 = vlaneseq
    %v94 = vshrl.u32 %v93, 7
    %v95 = vsub.s32 6, %v94
    %v96 = vrot.slane %v22, %v95
    %v97 = vlaneseq
    %v98 = vshrl.u32 %v97, 7
    %v99 = vsub.s32 7, %v98
    %v100 = vrot.slane %v22, %v99
    %v101 = vlaneseq
    %v102 = vshrl.u32 %v101, 7
    %v103 = vsub.s32 0, %v102
    %v104 = vrot.slane %v23, %v103
    %v105 = vlaneseq
    %v106 = vshrl.u32 %v105, 7
    %v107 = vsub.s32 1, %v106
    %v108 = vrot.slane %v23, %v107
    %v109 = vlaneseq
    %v110 = vshrl.u32 %v109, 7
    %v111 = vsub.s32 2, %v110
    %v112 = vrot.slane %v23, %v111
    %v113 = vlaneseq
    %v114 = vshrl.u32 %v113, 7
    %v115 = vsub.s32 3, %v114
    %v116 = vrot.slane %v23, %v115
    %v117 = vlaneseq
    %v118 = vshrl.u32 %v117, 7
    %v119 = vsub.s32 4, %v118
    %v120 = vrot.slane %v23, %v119
    %v121 = vlaneseq
    %v122 = vshrl.u32 %v121, 7
    %v123 = vsub.s32 5, %v122
    %v124 = vrot.slane %v23, %v123
    %v125 = vlaneseq
    %v126 = vshrl.u32 %v125, 7
    %v127 = vsub.s32 6, %v126
    %v128 = vrot.slane %v23, %v127
    %v129 = vlaneseq
    %v130 = vshrl.u32 %v129, 7
    %v131 = vsub.s32 7, %v130
    %v132 = vrot.slane %v23, %v131
    %v133 = vlaneseq
    %v134 = vshrl.u32 %v133, 7
    %v135 = vsub.s32 0, %v134
    %v136 = vrot.slane %v24, %v135
    %v137 = vlaneseq
    %v138 = vshrl.u32 %v137, 7
    %v139 = vsub.s32 1, %v138
    %v140 = vrot.slane %v24, %v139
    %v141 = vlaneseq
    %v142 = vshrl.u32 %v141, 7
    %v143 = vsub.s32 2, %v142
    %v144 = vrot.slane %v24, %v143
    %v145 = vlaneseq
    %v146 = vshrl.u32 %v145, 7
    %v147 = vsub.s32 3, %v146
    %v148 = vrot.slane %v24, %v147
    %v149 = vlaneseq
    %v150 = vshrl.u32 %v149, 7
    %v151 = vsub.s32 4, %v150
    %v152 = vrot.slane %v24, %v151
    %v153 = vlaneseq
    %v154 = vshrl.u32 %v153, 7
    %v155 = vsub.s32 5, %v154
    %v156 = vrot.slane %v24, %v155
    %v157 = vlaneseq
    %v158 = vshrl.u32 %v157, 7
    %v159 = vsub.s32 6, %v158
    %v160 = vrot.slane %v24, %v159
    %v161 = vlaneseq
    %v162 = vshrl.u32 %v161, 7
    %v163 = vsub.s32 7, %v162
    %v164 = vrot.slane %v24, %v163
    %v165 = vlaneseq
    %v166 = vshrl.u32 %v165, 7
    %v167 = vsub.s32 0, %v166
    %v168 = vrot.slane %v25, %v167
    %v169 = vlaneseq
    %v170 = vshrl.u32 %v169, 7
    %v171 = vsub.s32 1, %v170
    %v172 = vrot.slane %v25, %v171
    %v173 = vlaneseq
    %v174 = vshrl.u32 %v173, 7
    %v175 = vsub.s32 2, %v174
    %v176 = vrot.slane %v25, %v175
    %v177 = vlaneseq
    %v178 = vshrl.u32 %v177, 7
    %v179 = vsub.s32 3, %v178
    %v180 = vrot.slane %v25, %v179
    %v181 = vlaneseq
    %v182 = vshrl.u32 %v181, 7
    %v183 = vsub.s32 4, %v182
    %v184 = vrot.slane %v25, %v183
    %v185 = vlaneseq
    %v186 = vshrl.u32 %v185, 7
    %v187 = vsub.s32 5, %v186
    %v188 = vrot.slane %v25, %v187
    %v189 = vlaneseq
    %v190 = vshrl.u32 %v189, 7
    %v191 = vsub.s32 6, %v190
    %v192 = vrot.slane %v25, %v191
    %v193 = vlaneseq
    %v194 = vshrl.u32 %v193, 7
    %v195 = vsub.s32 7, %v194
    %v196 = vrot.slane %v25, %v195
    %v197 = vlaneseq
    %v198 = vshrl.u32 %v197, 7
    %v199 = vsub.s32 0, %v198
    %v200 = vrot.slane %v26, %v199
    %v201 = vlaneseq
    %v202 = vshrl.u32 %v201, 7
    %v203 = vsub.s32 1, %v202
    %v204 = vrot.slane %v26, %v203
    %v205 = vlaneseq
    %v206 = vshrl.u32 %v205, 7
    %v207 = vsub.s32 2, %v206
    %v208 = vrot.slane %v26, %v207
    %v209 = vlaneseq
    %v210 = vshrl.u32 %v209, 7
    %v211 = vsub.s32 3, %v210
    %v212 = vrot.slane %v26, %v211
    %v213 = vlaneseq
    %v214 = vshrl.u32 %v213, 7
    %v215 = vsub.s32 4, %v214
    %v216 = vrot.slane %v26, %v215
    %v217 = vlaneseq
    %v218 = vshrl.u32 %v217, 7
    %v219 = vsub.s32 5, %v218
    %v220 = vrot.slane %v26, %v219
    %v221 = vlaneseq
    %v222 = vshrl.u32 %v221, 7
    %v223 = vsub.s32 6, %v222
    %v224 = vrot.slane %v26, %v223
    %v225 = vlaneseq
    %v226 = vshrl.u32 %v225, 7
    %v227 = vsub.s32 7, %v226
    %v228 = vrot.slane %v26, %v227
    %v229 = vlaneseq
    %v230 = vshrl.u32 %v229, 7
    %v231 = vsub.s32 0, %v230
    %v232 = vrot.slane %v27, %v231
    %v233 = vlaneseq
    %v234 = vshrl.u32 %v233, 7
    %v235 = vsub.s32 1, %v234
    %v236 = vrot.slane %v27, %v235
    %v237 = vlaneseq
    %v238 = vshrl.u32 %v237, 7
    %v239 = vsub.s32 2, %v238
    %v240 = vrot.slane %v27, %v239
    %v241 = vlaneseq
    %v242 = vshrl.u32 %v241, 7
    %v243 = vsub.s32 3, %v242
    %v244 = vrot.slane %v27, %v243
    %v245 = vlaneseq
    %v246 = vshrl.u32 %v245, 7
    %v247 = vsub.s32 4, %v246
    %v248 = vrot.slane %v27, %v247
    %v249 = vlaneseq
    %v250 = vshrl.u32 %v249, 7
    %v251 = vsub.s32 5, %v250
    %v252 = vrot.slane %v27, %v251
    %v253 = vlaneseq
    %v254 = vshrl.u32 %v253, 7
    %v255 = vsub.s32 6, %v254
    %v256 = vrot.slane %v27, %v255
    %v257 = vlaneseq
    %v258 = vshrl.u32 %v257, 7
    %v259 = vsub.s32 7, %v258
    %v260 = vrot.slane %v27, %v259
    %v261 = vlaneseq
    %v262 = vshrl.u32 %v261, 7
    %v263 = vsub.s32 0, %v262
    %v264 = vrot.slane %v28, %v263
    %v265 = vlaneseq
    %v266 = vshrl.u32 %v265, 7
    %v267 = vsub.s32 1, %v266
    %v268 = vrot.slane %v28, %v267
    %v269 = vlaneseq
    %v270 = vshrl.u32 %v269, 7
    %v271 = vsub.s32 2, %v270
    %v272 = vrot.slane %v28, %v271
    %v273 = vlaneseq
    %v274 = vshrl.u32 %v273, 7
    %v275 = vsub.s32 3, %v274
    %v276 = vrot.slane %v28, %v275
    %v277 = vlaneseq
    %v278 = vshrl.u32 %v277, 7
    %v279 = vsub.s32 4, %v278
    %v280 = vrot.slane %v28, %v279
    %v281 = vlaneseq
    %v282 = vshrl.u32 %v281, 7
    %v283 = vsub.s32 5, %v282
    %v284 = vrot.slane %v28, %v283
    %v285 = vlaneseq
    %v286 = vshrl.u32 %v285, 7
    %v287 = vsub.s32 6, %v286
    %v288 = vrot.slane %v28, %v287
    %v289 = vlaneseq
    %v290 = vshrl.u32 %v289, 7
    %v291 = vsub.s32 7, %v290
    %v292 = vrot.slane %v28, %v291
    %v293 = vcombine.low %v40, %v44
    %v294 = vcombine.low %v48, %v52
    %v296 = vunpack.c.l.s4 1983009808
    %v297 = vunpack.c.0.s8 %v296
    %v298 = vlaneseq
    %v299 = vshrl.u32 %v298, 7
    %v300 = vsub.s32 %v297, %v299
    %v301 = vrot.slane %v293, %v300
    %v303 = vunpack.c.l.s4 1983009808
    %v304 = vunpack.c.0.s8 %v303
    %v305 = vlaneseq
    %v306 = vshrl.u32 %v305, 7
    %v307 = vsub.s32 %v304, %v306
    %v308 = vrot.slane %v294, %v307
    %v309 = vcombine.low %v301, %v308
    %v310 = vcombine.low %v56, %v60
    %v311 = vcombine.low %v64, %v68
    %v313 = vunpack.c.l.s4 1983009808
    %v314 = vunpack.c.0.s8 %v313
    %v315 = vlaneseq
    %v316 = vshrl.u32 %v315, 7
    %v317 = vsub.s32 %v314, %v316
    %v318 = vrot.slane %v310, %v317
    %v320 = vunpack.c.l.s4 1983009808
    %v321 = vunpack.c.0.s8 %v320
    %v322 = vlaneseq
    %v323 = vshrl.u32 %v322, 7
    %v324 = vsub.s32 %v321, %v323
    %v325 = vrot.slane %v311, %v324
    %v326 = vcombine.low %v318, %v325
    %v327 = vcombine.low %v72, %v76
    %v328 = vcombine.low %v80, %v84
    %v330 = vunpack.c.l.s4 1983009808
    %v331 = vunpack.c.0.s8 %v330
    %v332 = vlaneseq
    %v333 = vshrl.u32 %v332, 7
    %v334 = vsub.s32 %v331, %v333
    %v335 = vrot.slane %v327, %v334
    %v337 = vunpack.c.l.s4 1983009808
    %v338 = vunpack.c.0.s8 %v337
    %v339 = vlaneseq
    %v340 = vshrl.u32 %v339, 7
    %v341 = vsub.s32 %v338, %v340
    %v342 = vrot.slane %v328, %v341
    %v343 = vcombine.low %v335, %v342
    %v344 = vcombine.low %v88, %v92
    %v345 = vcombine.low %v96, %v100
    %v347 = vunpack.c.l.s4 1983009808
    %v348 = vunpack.c.0.s8 %v347
    %v349 = vlaneseq
    %v350 = vshrl.u32 %v349, 7
    %v351 = vsub.s32 %v348, %v350
    %v352 = vrot.slane %v344, %v351
    %v354 = vunpack.c.l.s4 1983009808
    %v355 = vunpack.c.0.s8 %v354
    %v356 = vlaneseq
    %v357 = vshrl.u32 %v356, 7
    %v358 = vsub.s32 %v355, %v357
    %v359 = vrot.slane %v345, %v358
    %v360 = vcombine.low %v352, %v359
    %v361 = vcombine.low %v104, %v108
    %v362 = vcombine.low %v112, %v116
    %v364 = vunpack.c.l.s4 1983009808
    %v365 = vunpack.c.0.s8 %v364
    %v366 = vlaneseq
    %v367 = vshrl.u32 %v366, 7
    %v368 = vsub.s32 %v365, %v367
    %v369 = vrot.slane %v361, %v368
    %v371 = vunpack.c.l.s4 1983009808
    %v372 = vunpack.c.0.s8 %v371
    %v373 = vlaneseq
    %v374 = vshrl.u32 %v373, 7
    %v375 = vsub.s32 %v372, %v374
    %v376 = vrot.slane %v362, %v375
    %v377 = vcombine.low %v369, %v376
    %v378 = vcombine.low %v120, %v124
    %v379 = vcombine.low %v128, %v132
    %v381 = vunpack.c.l.s4 1983009808
    %v382 = vunpack.c.0.s8 %v381
    %v383 = vlaneseq
    %v384 = vshrl.u32 %v383, 7
    %v385 = vsub.s32 %v382, %v384
    %v386 = vrot.slane %v378, %v385
    %v388 = vunpack.c.l.s4 1983009808
    %v389 = vunpack.c.0.s8 %v388
    %v390 = vlaneseq
    %v391 = vshrl.u32 %v390, 7
    %v392 = vsub.s32 %v389, %v391
    %v393 = vrot.slane %v379, %v392
    %v394 = vcombine.low %v386, %v393
    %v395 = vcombine.low %v136, %v140
    %v396 = vcombine.low %v144, %v148
    %v398 = vunpack.c.l.s4 1983009808
    %v399 = vunpack.c.0.s8 %v398
    %v400 = vlaneseq
    %v401 = vshrl.u32 %v400, 7
    %v402 = vsub.s32 %v399, %v401
    %v403 = vrot.slane %v395, %v402
    %v405 = vunpack.c.l.s4 1983009808
    %v406 = vunpack.c.0.s8 %v405
    %v407 = vlaneseq
    %v408 = vshrl.u32 %v407, 7
    %v409 = vsub.s32 %v406, %v408
    %v410 = vrot.slane %v396, %v409
    %v411 = vcombine.low %v403, %v410
    %v412 = vcombine.low %v152, %v156
    %v413 = vcombine.low %v160, %v164
    %v415 = vunpack.c.l.s4 1983009808
    %v416 = vunpack.c.0.s8 %v415
    %v417 = vlaneseq
    %v418 = vshrl.u32 %v417, 7
    %v419 = vsub.s32 %v416, %v418
    %v420 = vrot.slane %v412, %v419
    %v422 = vunpack.c.l.s4 1983009808
    %v423 = vunpack.c.0.s8 %v422
    %v424 = vlaneseq
    %v425 = vshrl.u32 %v424, 7
    %v426 = vsub.s32 %v423, %v425
    %v427 = vrot.slane %v413, %v426
    %v428 = vcombine.low %v420, %v427
    %v429 = vcombine.low %v168, %v172
    %v430 = vcombine.low %v176, %v180
    %v432 = vunpack.c.l.s4 1983009808
    %v433 = vunpack.c.0.s8 %v432
    %v434 = vlaneseq
    %v435 = vshrl.u32 %v434, 7
    %v436 = vsub.s32 %v433, %v435
    %v437 = vrot.slane %v429, %v436
    %v439 = vunpack.c.l.s4 1983009808
    %v440 = vunpack.c.0.s8 %v439
    %v441 = vlaneseq
    %v442 = vshrl.u32 %v441, 7
    %v443 = vsub.s32 %v440, %v442
    %v444 = vrot.slane %v430, %v443
    %v445 = vcombine.low %v437, %v444
    %v446 = vcombine.low %v184, %v188
    %v447 = vcombine.low %v192, %v196
    %v449 = vunpack.c.l.s4 1983009808
    %v450 = vunpack.c.0.s8 %v449
    %v451 = vlaneseq
    %v452 = vshrl.u32 %v451, 7
    %v453 = vsub.s32 %v450, %v452
    %v454 = vrot.slane %v446, %v453
    %v456 = vunpack.c.l.s4 1983009808
    %v457 = vunpack.c.0.s8 %v456
    %v458 = vlaneseq
    %v459 = vshrl.u32 %v458, 7
    %v460 = vsub.s32 %v457, %v459
    %v461 = vrot.slane %v447, %v460
    %v462 = vcombine.low %v454, %v461
    %v463 = vcombine.low %v200, %v204
    %v464 = vcombine.low %v208, %v212
    %v466 = vunpack.c.l.s4 1983009808
    %v467 = vunpack.c.0.s8 %v466
    %v468 = vlaneseq
    %v469 = vshrl.u32 %v468, 7
    %v470 = vsub.s32 %v467, %v469
    %v471 = vrot.slane %v463, %v470
    %v473 = vunpack.c.l.s4 1983009808
    %v474 = vunpack.c.0.s8 %v473
    %v475 = vlaneseq
    %v476 = vshrl.u32 %v475, 7
    %v477 = vsub.s32 %v474, %v476
    %v478 = vrot.slane %v464, %v477
    %v479 = vcombine.low %v471, %v478
    %v480 = vcombine.low %v216, %v220
    %v481 = vcombine.low %v224, %v228
    %v483 = vunpack.c.l.s4 1983009808
    %v484 = vunpack.c.0.s8 %v483
    %v485 = vlaneseq
    %v486 = vshrl.u32 %v485, 7
    %v487 = vsub.s32 %v484, %v486
    %v488 = vrot.slane %v480, %v487
    %v490 = vunpack.c.l.s4 1983009808
    %v491 = vunpack.c.0.s8 %v490
    %v492 = vlaneseq
    %v493 = vshrl.u32 %v492, 7
    %v494 = vsub.s32 %v491, %v493
    %v495 = vrot.slane %v481, %v494
    %v496 = vcombine.low %v488, %v495
    %v497 = vcombine.low %v232, %v236
    %v498 = vcombine.low %v240, %v244
    %v500 = vunpack.c.l.s4 1983009808
    %v501 = vunpack.c.0.s8 %v500
    %v502 = vlaneseq
    %v503 = vshrl.u32 %v502, 7
    %v504 = vsub.s32 %v501, %v503
    %v505 = vrot.slane %v497, %v504
    %v507 = vunpack.c.l.s4 1983009808
    %v508 = vunpack.c.0.s8 %v507
    %v509 = vlaneseq
    %v510 = vshrl.u32 %v509, 7
    %v511 = vsub.s32 %v508, %v510
    %v512 = vrot.slane %v498, %v511
    %v513 = vcombine.low %v505, %v512
    %v514 = vcombine.low %v248, %v252
    %v515 = vcombine.low %v256, %v260
    %v517 = vunpack.c.l.s4 1983009808
    %v518 = vunpack.c.0.s8 %v517
    %v519 = vlaneseq
    %v520 = vshrl.u32 %v519, 7
    %v521 = vsub.s32 %v518, %v520
    %v522 = vrot.slane %v514, %v521
    %v524 = vunpack.c.l.s4 1983009808
    %v525 = vunpack.c.0.s8 %v524
    %v526 = vlaneseq
    %v527 = vshrl.u32 %v526, 7
    %v528 = vsub.s32 %v525, %v527
    %v529 = vrot.slane %v515, %v528
    %v530 = vcombine.low %v522, %v529
    %v531 = vcombine.low %v264, %v268
    %v532 = vcombine.low %v272, %v276
    %v534 = vunpack.c.l.s4 1983009808
    %v535 = vunpack.c.0.s8 %v534
    %v536 = vlaneseq
    %v537 = vshrl.u32 %v536, 7
    %v538 = vsub.s32 %v535, %v537
    %v539 = vrot.slane %v531, %v538
    %v541 = vunpack.c.l.s4 1983009808
    %v542 = vunpack.c.0.s8 %v541
    %v543 = vlaneseq
    %v544 = vshrl.u32 %v543, 7
    %v545 = vsub.s32 %v542, %v544
    %v546 = vrot.slane %v532, %v545
    %v547 = vcombine.low %v539, %v546
    %v548 = vcombine.low %v280, %v284
    %v549 = vcombine.low %v288, %v292
    %v551 = vunpack.c.l.s4 1983009808
    %v552 = vunpack.c.0.s8 %v551
    %v553 = vlaneseq
    %v554 = vshrl.u32 %v553, 7
    %v555 = vsub.s32 %v552, %v554
    %v556 = vrot.slane %v548, %v555
    %v558 = vunpack.c.l.s4 1983009808
    %v559 = vunpack.c.0.s8 %v558
    %v560 = vlaneseq
    %v561 = vshrl.u32 %v560, 7
    %v562 = vsub.s32 %v559, %v561
    %v563 = vrot.slane %v549, %v562
    %v564 = vcombine.low %v556, %v563
    %581 = vst [vmem:[#allocation5] sm:$0xff] %v309
    %582 = vst [vmem:[#allocation5 + $0x8] sm:$0xff] %v326
    %583 = vst [vmem:[#allocation5 + $0x10] sm:$0xff] %v343
    %584 = vst [vmem:[#allocation5 + $0x18] sm:$0xff] %v360
    %585 = vst [vmem:[#allocation5 + $0x20] sm:$0xff] %v377
    %586 = vst [vmem:[#allocation5 + $0x28] sm:$0xff] %v394
    %587 = vst [vmem:[#allocation5 + $0x30] sm:$0xff] %v411
    %588 = vst [vmem:[#allocation5 + $0x38] sm:$0xff] %v428
    %589 = vst [vmem:[#allocation5 + $0x40] sm:$0xff] %v445
    %590 = vst [vmem:[#allocation5 + $0x48] sm:$0xff] %v462
    %591 = vst [vmem:[#allocation5 + $0x50] sm:$0xff] %v479
    %592 = vst [vmem:[#allocation5 + $0x58] sm:$0xff] %v496
    %593 = vst [vmem:[#allocation5 + $0x60] sm:$0xff] %v513
    %594 = vst [vmem:[#allocation5 + $0x68] sm:$0xff] %v530
    %595 = vst [vmem:[#allocation5 + $0x70] sm:$0xff] %v547
    %596 = vst [vmem:[#allocation5 + $0x78] sm:$0xff] %v564
    // Predicated region
    $region10: #{tpu_custom_call.1} parent=1 // pred_check
      _
    $region11: #{tpu_custom_call.1} parent=1 // pred_check_branch
      %598 = sbr.rel (0) target = $region13
    $region12: #{tpu_custom_call.1} parent=1 // pred_region
      %s600 = ssub.s32 2048, 2048
      %601 = vsyncadd [#allocation4], %s600
      %s603 = sshll.u32 [#allocation5], 4
      %s604 = int_to_ptr.vmem [resolvable:$true] %s603
      %606 = dma.vmem_to_hbm [thread:$0]  %s604, 2048, %s1, [#allocation4]
    $region13: #{tpu_custom_call.1} parent=1 // pred_fallthru
      _
    // Predicated region
    $region14: #{tpu_custom_call.1} parent=1 // pred_check
      _
    $region15: #{tpu_custom_call.1} parent=1 // pred_check_branch
      %608 = sbr.rel (0) target = $region17
    $region16: #{tpu_custom_call.1} parent=1 // pred_region
      %609 = dma.done [#allocation4], 2048
    $region17: #{tpu_custom_call.1} parent=1 // pred_fallthru
      _
    %610 = vsyncpa [#allocation3], 1
    %611 = vsyncpa [#allocation4], 1

</llo_original>
